<compile_context>
chip_gen: v7x
topology: tpu7x:2x2x1
jax: 0.10.0
libtpu: 0.0.40
codegen_flags: <defaults>
</compile_context>

<pallas_src>
import functools

import jax
import jax.numpy as jnp
from jax.experimental import pallas as pl
from jax.experimental.pallas import tpu as pltpu


def _apply_act(y, name):
    if name == "Relu":
        return jnp.maximum(y, 0.0)
    if name == "Linear":
        return y
    if name == "Sigmoid":
        return jax.nn.sigmoid(y)
    if name == "Tanh":
        return jnp.tanh(y)
    # matches the PyTorch fallback (ReLU) for unknown activation names
    return jnp.maximum(y, 0.0)


def _decoder_kernel(x_ref, w0_ref, b0_ref, wh_ref, bh_ref, wo_ref, bo_ref,
                    o_ref, *, activation, last_activation, num_hidden,
                    matmul_dtype):
    """Fused: 1 input layer + `num_hidden` hidden layers + output layer.

    All matmuls hit the MXU with f32 accumulation; bias-add + activation stay
    in f32 on the VPU/EUP. The running activation `h` never touches HBM.
    Weights arrive already in `matmul_dtype` (pre-cast once in the wrapper);
    only the per-tile running activation is cast here.
    """

    def mm(a, w):
        if matmul_dtype is not None:
            a = a.astype(matmul_dtype)
        return jnp.dot(a, w, preferred_element_type=jnp.float32)

    # Layer 0: (block_m, input_dim) @ (input_dim, hidden_dim)
    h = _apply_act(mm(x_ref[...], w0_ref[...]) + b0_ref[...], activation)

    # Hidden layers 1..num_layers-1 (statically unrolled; weights VMEM-resident).
    for i in range(num_hidden):
        h = _apply_act(mm(h, wh_ref[i]) + bh_ref[i], activation)

    # Output layer: store the true (block_m, output_dim) tile directly
    # (no padded slab, no wrapper slice).
    y = _apply_act(mm(h, wo_ref[...]) + bo_ref[...], last_activation)
    o_ref[...] = y.astype(o_ref.dtype)


def prepare_decoder_params(params, matmul_dtype=None):
    """One-time parameter preparation (hoisted out of the per-call hot path).

    Stacks the identical hidden-layer weights/biases and (optionally) pre-casts
    the weight matrices to `matmul_dtype` (e.g. bf16) so the kernel's DMA/VMEM
    footprint is halved and no per-grid-step VPU casts of invariant data occur.
    Biases are kept in f32 (bias-add + activation run in f32 on the VPU/EUP).
    """
    layers = params["layers"]
    assert len(layers) >= 2, "fused kernel expects >= 2 hidden Linear layers"
    w0, b0 = layers[0]                               # (input_dim, hidden), (1, hidden)
    wh = jnp.stack([w for (w, _) in layers[1:]])     # (num_hidden, hidden, hidden)
    bh = jnp.stack([b for (_, b) in layers[1:]])     # (num_hidden, 1, hidden)
    wo, bo = params["out"]                           # (hidden, out_dim), (1, out_dim)

    if matmul_dtype is not None:
        w0 = w0.astype(matmul_dtype)
        wh = wh.astype(matmul_dtype)
        wo = wo.astype(matmul_dtype)

    return {
        "w0": w0, "b0": b0.astype(jnp.float32),
        "wh": wh, "bh": bh.astype(jnp.float32),
        "wo": wo, "bo": bo.astype(jnp.float32),
        "matmul_dtype": matmul_dtype,
    }


def _choose_block_m(M):
    """Row-tile size: big tiles (<= 2048) to amortize the ~0.35 us/step grid
    overhead, but guarantee >= 2 grid steps when M >= 16 so v7x's two
    TensorCores both get work via the 'parallel' grid axis."""
    round8 = lambda n: ((n + 7) // 8) * 8
    block_m = min(round8(M), 2048)
    if M >= 16:
        block_m = min(block_m, round8(pl.cdiv(M, 2)))
    return max(block_m, 8)


def decoder_forward(x, prepared, activation, last_activation, *, block_m=None):
    """Run the whole decoder in a single fused Pallas kernel.

    `prepared` comes from prepare_decoder_params (call it once, not per step).
    """
    M, input_dim = x.shape
    w0, b0 = prepared["w0"], prepared["b0"]
    wh, bh = prepared["wh"], prepared["bh"]
    wo, bo = prepared["wo"], prepared["bo"]
    matmul_dtype = prepared["matmul_dtype"]

    hidden_dim = w0.shape[1]
    num_hidden = wh.shape[0]
    output_dim = wo.shape[1]

    if block_m is None:
        block_m = _choose_block_m(M)
    grid = (pl.cdiv(M, block_m),)

    kernel = functools.partial(
        _decoder_kernel,
        activation=activation,
        last_activation=last_activation,
        num_hidden=num_hidden,
        matmul_dtype=matmul_dtype,
    )

    # NOTE: weight/bias inputs are grid-invariant (index_map always (0, ...));
    # Pallas keeps them resident across grid steps. Total param footprint is
    # ~0.36 MB (f32) so VMEM is a non-issue on v5e/v6e/v7x even at block_m=2048.
    return pl.pallas_call(
        kernel,
        out_shape=jax.ShapeDtypeStruct((M, output_dim), x.dtype),
        grid_spec=pltpu.PrefetchScalarGridSpec(
            num_scalar_prefetch=0,
            grid=grid,
            in_specs=[
                pl.BlockSpec((block_m, input_dim), lambda i: (i, 0)),            # x tile
                pl.BlockSpec((input_dim, hidden_dim), lambda i: (0, 0)),          # W0
                pl.BlockSpec((1, hidden_dim), lambda i: (0, 0)),                  # b0
                pl.BlockSpec((num_hidden, hidden_dim, hidden_dim),
                             lambda i: (0, 0, 0)),                                # stacked Wh
                pl.BlockSpec((num_hidden, 1, hidden_dim), lambda i: (0, 0, 0)),   # stacked bh
                pl.BlockSpec((hidden_dim, output_dim), lambda i: (0, 0)),         # W_out
                pl.BlockSpec((1, output_dim), lambda i: (0, 0)),                  # b_out
            ],
            out_specs=pl.BlockSpec((block_m, output_dim), lambda i: (i, 0)),
        ),
        compiler_params=pltpu.CompilerParams(
            dimension_semantics=("parallel",),
        ),
    )(x, w0, b0, wh, bh, wo, bo)


def init_decoder_params(key, input_dim, output_dim, hidden_dim, num_layers, bias):
    """Deterministic synthetic parameters (same shapes as the PyTorch module)."""
    params = {"layers": [], "out": None}
    for i in range(num_layers):
        in_d = input_dim if i == 0 else hidden_dim
        key, kw, kb = jax.random.split(key, 3)
        scale = 1.0 / jnp.sqrt(jnp.float32(in_d))
        w = jax.random.uniform(kw, (in_d, hidden_dim), jnp.float32, -scale, scale)
        if bias:
            b = jax.random.uniform(kb, (1, hidden_dim), jnp.float32, -scale, scale)
        else:
            b = jnp.zeros((1, hidden_dim), jnp.float32)
        params["layers"].append((w, b))
    key, kw, kb = jax.random.split(key, 3)
    scale = 1.0 / jnp.sqrt(jnp.float32(hidden_dim))
    w = jax.random.uniform(kw, (hidden_dim, output_dim), jnp.float32, -scale, scale)
    if bias:
        b = jax.random.uniform(kb, (1, output_dim), jnp.float32, -scale, scale)
    else:
        b = jnp.zeros((1, output_dim), jnp.float32)
    params["out"] = (w, b)
    return params


def decoder_ref(x, params, activation, last_activation):
    """Pure-JAX reference (mirrors the PyTorch forward)."""
    h = x
    for (w, b) in params["layers"]:
        h = _apply_act(h @ w + b, activation)
    w, b = params["out"]
    return _apply_act(h @ w + b, last_activation)


if __name__ == "__main__":
    # Module config (small, consistent with the PyTorch Decoder defaults)
    input_dim, output_dim = 32, 16
    hidden_dim, num_layers = 128, 6
    activation, last_activation = "Relu", "Sigmoid"
    bias = True
    batch = 8

    key = jax.random.PRNGKey(0)
    key, kx = jax.random.split(key)
    x = jax.random.normal(kx, (batch, input_dim), jnp.float32)

    params = init_decoder_params(key, input_dim, output_dim, hidden_dim,
                                 num_layers, bias)

    # One-time preparation (hoisted out of the hot path). Use
    # matmul_dtype=jnp.bfloat16 here for v5e/v6e/v7x MXU throughput at large
    # batch; f32 kept as default so the strict 1e-5 check below passes.
    prepared = prepare_decoder_params(params, matmul_dtype=None)

    out = decoder_forward(x, prepared, activation, last_activation)
    out = jax.block_until_ready(out)

    ref = decoder_ref(x, params, activation, last_activation)
    assert out.shape == (batch, output_dim)
    assert jnp.allclose(out, ref, atol=1e-5, rtol=1e-5)

    print("KERNEL_OK")
</pallas_src>

<mosaic_0001>
module attributes {stable_mosaic.version = 11 : i64} {
  func.func @_decoder_kernel(%arg0: i32, %arg1: memref<8x32xf32, #tpu.memory_space<vmem>>, %arg2: memref<32x128xf32, #tpu.memory_space<vmem>>, %arg3: memref<1x128xf32, #tpu.memory_space<vmem>>, %arg4: memref<5x128x128xf32, #tpu.memory_space<vmem>>, %arg5: memref<5x1x128xf32, #tpu.memory_space<vmem>>, %arg6: memref<128x16xf32, #tpu.memory_space<vmem>>, %arg7: memref<1x16xf32, #tpu.memory_space<vmem>>, %arg8: memref<8x16xf32, #tpu.memory_space<vmem>>) attributes {dimension_semantics = [#tpu.dimension_semantics<parallel>], iteration_bounds = array<i64: 1>, scalar_prefetch = 0 : i64, scratch_operands = 0 : i64, tpu.core_type = #tpu.core_type<tc>, window_params = [{transform_indices = @transform_0, window_bounds = array<i64: 8, 32>}, {pipeline_mode = #tpu.pipeline_mode<synchronous>, transform_indices = @transform_1, window_bounds = array<i64: 32, 128>}, {pipeline_mode = #tpu.pipeline_mode<synchronous>, transform_indices = @transform_2, window_bounds = array<i64: 1, 128>}, {pipeline_mode = #tpu.pipeline_mode<synchronous>, transform_indices = @transform_3, window_bounds = array<i64: 5, 128, 128>}, {pipeline_mode = #tpu.pipeline_mode<synchronous>, transform_indices = @transform_4, window_bounds = array<i64: 5, 1, 128>}, {pipeline_mode = #tpu.pipeline_mode<synchronous>, transform_indices = @transform_5, window_bounds = array<i64: 128, 16>}, {pipeline_mode = #tpu.pipeline_mode<synchronous>, transform_indices = @transform_6, window_bounds = array<i64: 1, 16>}, {transform_indices = @transform_7, window_bounds = array<i64: 8, 16>}]} {
    %c0 = arith.constant 0 : index
    %c0_0 = arith.constant 0 : index
    %0 = vector.load %arg1[%c0, %c0_0] : memref<8x32xf32, #tpu.memory_space<vmem>>, vector<8x32xf32>
    %c0_1 = arith.constant 0 : index
    %c0_2 = arith.constant 0 : index
    %1 = vector.load %arg2[%c0_1, %c0_2] : memref<32x128xf32, #tpu.memory_space<vmem>>, vector<32x128xf32>
    %cst = arith.constant dense<0.000000e+00> : vector<8x128xf32>
    %2 = tpu.matmul %0, %1, %cst {dimension_numbers = #tpu.dot_dimension_numbers<[1], [0], [0], [1], [0, 0, 1, 1], [], []>} : vector<8x32xf32>, vector<32x128xf32>, vector<8x128xf32> -> vector<8x128xf32>
    %c0_3 = arith.constant 0 : index
    %c0_4 = arith.constant 0 : index
    %3 = vector.load %arg3[%c0_3, %c0_4] : memref<1x128xf32, #tpu.memory_space<vmem>>, vector<1x128xf32>
    %4 = vector.broadcast %3 : vector<1x128xf32> to vector<8x128xf32>
    %5 = arith.addf %2, %4 : vector<8x128xf32>
    %cst_5 = arith.constant 0.000000e+00 : f32
    %6 = vector.broadcast %cst_5 : f32 to vector<8x128xf32>
    %7 = arith.maximumf %5, %6 : vector<8x128xf32>
    %c0_6 = arith.constant 0 : index
    %c0_7 = arith.constant 0 : index
    %c0_8 = arith.constant 0 : index
    %8 = vector.load %arg4[%c0_6, %c0_7, %c0_8] : memref<5x128x128xf32, #tpu.memory_space<vmem>>, vector<1x128x128xf32>
    %9 = vector.shape_cast %8 : vector<1x128x128xf32> to vector<128x128xf32>
    %cst_9 = arith.constant dense<0.000000e+00> : vector<8x128xf32>
    %10 = tpu.matmul %7, %9, %cst_9 {dimension_numbers = #tpu.dot_dimension_numbers<[1], [0], [0], [1], [0, 0, 1, 1], [], []>} : vector<8x128xf32>, vector<128x128xf32>, vector<8x128xf32> -> vector<8x128xf32>
    %c0_10 = arith.constant 0 : index
    %c0_11 = arith.constant 0 : index
    %c0_12 = arith.constant 0 : index
    %11 = vector.load %arg5[%c0_10, %c0_11, %c0_12] : memref<5x1x128xf32, #tpu.memory_space<vmem>>, vector<1x1x128xf32>
    %12 = vector.shape_cast %11 : vector<1x1x128xf32> to vector<1x128xf32>
    %13 = vector.broadcast %12 : vector<1x128xf32> to vector<8x128xf32>
    %14 = arith.addf %10, %13 : vector<8x128xf32>
    %cst_13 = arith.constant 0.000000e+00 : f32
    %15 = vector.broadcast %cst_13 : f32 to vector<8x128xf32>
    %16 = arith.maximumf %14, %15 : vector<8x128xf32>
    %c1 = arith.constant 1 : index
    %c0_14 = arith.constant 0 : index
    %c0_15 = arith.constant 0 : index
    %17 = vector.load %arg4[%c1, %c0_14, %c0_15] : memref<5x128x128xf32, #tpu.memory_space<vmem>>, vector<1x128x128xf32>
    %18 = vector.shape_cast %17 : vector<1x128x128xf32> to vector<128x128xf32>
    %cst_16 = arith.constant dense<0.000000e+00> : vector<8x128xf32>
    %19 = tpu.matmul %16, %18, %cst_16 {dimension_numbers = #tpu.dot_dimension_numbers<[1], [0], [0], [1], [0, 0, 1, 1], [], []>} : vector<8x128xf32>, vector<128x128xf32>, vector<8x128xf32> -> vector<8x128xf32>
    %c1_17 = arith.constant 1 : index
    %c0_18 = arith.constant 0 : index
    %c0_19 = arith.constant 0 : index
    %20 = vector.load %arg5[%c1_17, %c0_18, %c0_19] : memref<5x1x128xf32, #tpu.memory_space<vmem>>, vector<1x1x128xf32>
    %21 = vector.shape_cast %20 : vector<1x1x128xf32> to vector<1x128xf32>
    %22 = vector.broadcast %21 : vector<1x128xf32> to vector<8x128xf32>
    %23 = arith.addf %19, %22 : vector<8x128xf32>
    %cst_20 = arith.constant 0.000000e+00 : f32
    %24 = vector.broadcast %cst_20 : f32 to vector<8x128xf32>
    %25 = arith.maximumf %23, %24 : vector<8x128xf32>
    %c2 = arith.constant 2 : index
    %c0_21 = arith.constant 0 : index
    %c0_22 = arith.constant 0 : index
    %26 = vector.load %arg4[%c2, %c0_21, %c0_22] : memref<5x128x128xf32, #tpu.memory_space<vmem>>, vector<1x128x128xf32>
    %27 = vector.shape_cast %26 : vector<1x128x128xf32> to vector<128x128xf32>
    %cst_23 = arith.constant dense<0.000000e+00> : vector<8x128xf32>
    %28 = tpu.matmul %25, %27, %cst_23 {dimension_numbers = #tpu.dot_dimension_numbers<[1], [0], [0], [1], [0, 0, 1, 1], [], []>} : vector<8x128xf32>, vector<128x128xf32>, vector<8x128xf32> -> vector<8x128xf32>
    %c2_24 = arith.constant 2 : index
    %c0_25 = arith.constant 0 : index
    %c0_26 = arith.constant 0 : index
    %29 = vector.load %arg5[%c2_24, %c0_25, %c0_26] : memref<5x1x128xf32, #tpu.memory_space<vmem>>, vector<1x1x128xf32>
    %30 = vector.shape_cast %29 : vector<1x1x128xf32> to vector<1x128xf32>
    %31 = vector.broadcast %30 : vector<1x128xf32> to vector<8x128xf32>
    %32 = arith.addf %28, %31 : vector<8x128xf32>
    %cst_27 = arith.constant 0.000000e+00 : f32
    %33 = vector.broadcast %cst_27 : f32 to vector<8x128xf32>
    %34 = arith.maximumf %32, %33 : vector<8x128xf32>
    %c3 = arith.constant 3 : index
    %c0_28 = arith.constant 0 : index
    %c0_29 = arith.constant 0 : index
    %35 = vector.load %arg4[%c3, %c0_28, %c0_29] : memref<5x128x128xf32, #tpu.memory_space<vmem>>, vector<1x128x128xf32>
    %36 = vector.shape_cast %35 : vector<1x128x128xf32> to vector<128x128xf32>
    %cst_30 = arith.constant dense<0.000000e+00> : vector<8x128xf32>
    %37 = tpu.matmul %34, %36, %cst_30 {dimension_numbers = #tpu.dot_dimension_numbers<[1], [0], [0], [1], [0, 0, 1, 1], [], []>} : vector<8x128xf32>, vector<128x128xf32>, vector<8x128xf32> -> vector<8x128xf32>
    %c3_31 = arith.constant 3 : index
    %c0_32 = arith.constant 0 : index
    %c0_33 = arith.constant 0 : index
    %38 = vector.load %arg5[%c3_31, %c0_32, %c0_33] : memref<5x1x128xf32, #tpu.memory_space<vmem>>, vector<1x1x128xf32>
    %39 = vector.shape_cast %38 : vector<1x1x128xf32> to vector<1x128xf32>
    %40 = vector.broadcast %39 : vector<1x128xf32> to vector<8x128xf32>
    %41 = arith.addf %37, %40 : vector<8x128xf32>
    %cst_34 = arith.constant 0.000000e+00 : f32
    %42 = vector.broadcast %cst_34 : f32 to vector<8x128xf32>
    %43 = arith.maximumf %41, %42 : vector<8x128xf32>
    %c4 = arith.constant 4 : index
    %c0_35 = arith.constant 0 : index
    %c0_36 = arith.constant 0 : index
    %44 = vector.load %arg4[%c4, %c0_35, %c0_36] : memref<5x128x128xf32, #tpu.memory_space<vmem>>, vector<1x128x128xf32>
    %45 = vector.shape_cast %44 : vector<1x128x128xf32> to vector<128x128xf32>
    %cst_37 = arith.constant dense<0.000000e+00> : vector<8x128xf32>
    %46 = tpu.matmul %43, %45, %cst_37 {dimension_numbers = #tpu.dot_dimension_numbers<[1], [0], [0], [1], [0, 0, 1, 1], [], []>} : vector<8x128xf32>, vector<128x128xf32>, vector<8x128xf32> -> vector<8x128xf32>
    %c4_38 = arith.constant 4 : index
    %c0_39 = arith.constant 0 : index
    %c0_40 = arith.constant 0 : index
    %47 = vector.load %arg5[%c4_38, %c0_39, %c0_40] : memref<5x1x128xf32, #tpu.memory_space<vmem>>, vector<1x1x128xf32>
    %48 = vector.shape_cast %47 : vector<1x1x128xf32> to vector<1x128xf32>
    %49 = vector.broadcast %48 : vector<1x128xf32> to vector<8x128xf32>
    %50 = arith.addf %46, %49 : vector<8x128xf32>
    %cst_41 = arith.constant 0.000000e+00 : f32
    %51 = vector.broadcast %cst_41 : f32 to vector<8x128xf32>
    %52 = arith.maximumf %50, %51 : vector<8x128xf32>
    %c0_42 = arith.constant 0 : index
    %c0_43 = arith.constant 0 : index
    %53 = vector.load %arg6[%c0_42, %c0_43] : memref<128x16xf32, #tpu.memory_space<vmem>>, vector<128x16xf32>
    %cst_44 = arith.constant dense<0.000000e+00> : vector<8x16xf32>
    %54 = tpu.matmul %52, %53, %cst_44 {dimension_numbers = #tpu.dot_dimension_numbers<[1], [0], [0], [1], [0, 0, 1, 1], [], []>} : vector<8x128xf32>, vector<128x16xf32>, vector<8x16xf32> -> vector<8x16xf32>
    %c0_45 = arith.constant 0 : index
    %c0_46 = arith.constant 0 : index
    %55 = vector.load %arg7[%c0_45, %c0_46] : memref<1x16xf32, #tpu.memory_space<vmem>>, vector<1x16xf32>
    %56 = vector.broadcast %55 : vector<1x16xf32> to vector<8x16xf32>
    %57 = arith.addf %54, %56 : vector<8x16xf32>
    %58 = arith.negf %57 : vector<8x16xf32>
    %59 = math.exp %58 : vector<8x16xf32>
    %cst_47 = arith.constant 1.000000e+00 : f32
    %60 = vector.broadcast %cst_47 : f32 to vector<8x16xf32>
    %61 = arith.addf %60, %59 : vector<8x16xf32>
    %62 = arith.divf %60, %61 : vector<8x16xf32>
    %c0_48 = arith.constant 0 : index
    %c0_49 = arith.constant 0 : index
    %63 = vector.load %arg8[%c0_48, %c0_49] : memref<8x16xf32, #tpu.memory_space<vmem>>, vector<8x16xf32>
    tpu.vector_store %arg8[%c0_48, %c0_49], %62 {strides = array<i32>} : memref<8x16xf32, #tpu.memory_space<vmem>>, vector<8x16xf32>,
    return
  }
  func.func @transform_0(%arg0: i32) -> (i32, i32) {
    %c0_i32 = arith.constant 0 : i32
    %c0_i32_0 = arith.constant 0 : i32
    return %arg0, %c0_i32 : i32, i32
  }
  func.func @transform_1(%arg0: i32) -> (i32, i32) {
    %c0_i32 = arith.constant 0 : i32
    %c0_i32_0 = arith.constant 0 : i32
    %c0_i32_1 = arith.constant 0 : i32
    return %c0_i32, %c0_i32_0 : i32, i32
  }
  func.func @transform_2(%arg0: i32) -> (i32, i32) {
    %c0_i32 = arith.constant 0 : i32
    %c0_i32_0 = arith.constant 0 : i32
    %c0_i32_1 = arith.constant 0 : i32
    return %c0_i32, %c0_i32_0 : i32, i32
  }
  func.func @transform_3(%arg0: i32) -> (i32, i32, i32) {
    %c0_i32 = arith.constant 0 : i32
    %c0_i32_0 = arith.constant 0 : i32
    %c0_i32_1 = arith.constant 0 : i32
    %c0_i32_2 = arith.constant 0 : i32
    return %c0_i32, %c0_i32_0, %c0_i32_1 : i32, i32, i32
  }
  func.func @transform_4(%arg0: i32) -> (i32, i32, i32) {
    %c0_i32 = arith.constant 0 : i32
    %c0_i32_0 = arith.constant 0 : i32
    %c0_i32_1 = arith.constant 0 : i32
    %c0_i32_2 = arith.constant 0 : i32
    return %c0_i32, %c0_i32_0, %c0_i32_1 : i32, i32, i32
  }
  func.func @transform_5(%arg0: i32) -> (i32, i32) {
    %c0_i32 = arith.constant 0 : i32
    %c0_i32_0 = arith.constant 0 : i32
    %c0_i32_1 = arith.constant 0 : i32
    return %c0_i32, %c0_i32_0 : i32, i32
  }
  func.func @transform_6(%arg0: i32) -> (i32, i32) {
    %c0_i32 = arith.constant 0 : i32
    %c0_i32_0 = arith.constant 0 : i32
    %c0_i32_1 = arith.constant 0 : i32
    return %c0_i32, %c0_i32_0 : i32, i32
  }
  func.func @transform_7(%arg0: i32) -> (i32, i32) {
    %c0_i32 = arith.constant 0 : i32
    %c0_i32_0 = arith.constant 0 : i32
    return %arg0, %c0_i32 : i32, i32
  }
}

</mosaic_0001>

<llo_original>
// kernel: tpu_custom_call.1
$region0: #{tpu_custom_call.1}
  #allocation0 [shape = 'u32[]', space=smem, size = 0x4, offset = 0x4, fixed_abs, tag = 'smem constant byte address 0x4 - core index']
  #allocation1 [shape = 'u32[144,128]{1,0:T(1,128)}', space=vmem, size = 0x12000, scoped, tag = 'internal scratch']
  %s0 = inlined_call_operand.vmem [shape: f32[8,32], index: 0, kind: input, shape index: {}]
  %s1 = inlined_call_operand.vmem [shape: f32[32,128], index: 1, kind: input, shape index: {}]
  %s2 = inlined_call_operand.vmem [shape: f32[1,128], index: 2, kind: input, shape index: {}]
  %s3 = inlined_call_operand.hbm [shape: f32[5,128,128], index: 3, kind: input, shape index: {}]
  %s4 = inlined_call_operand.vmem [shape: f32[5,1,128], index: 4, kind: input, shape index: {}]
  %s5 = inlined_call_operand.vmem [shape: f32[128,16], index: 5, kind: input, shape index: {}]
  %s6 = inlined_call_operand.vmem [shape: f32[1,16], index: 6, kind: input, shape index: {}]
  %s7 = inlined_call_operand.hbm [shape: f32[8,16], index: 7, kind: output, shape index: {}]
  %s8 = sld [smem:[#allocation0]]
  $region42: #{tpu_custom_call.1} parent=0
    _
  %s10 = ssub.s32 1, %s8
  %s11 = scalar_select 0, %s10, %s8
  $region1: #{tpu_custom_call.1} parent=0
    #allocation2 [shape = 'u8[327680]{0}', space=vmem, size = 0x50000, scoped, tag = 'input window, operand 3, single buffered']
    #allocation3 [shape = 's32[1]{0}', space=sflag, size = 0x4, scoped, tag = 'scoped memory for tpu_custom_call.1']
    #allocation4 [shape = 's32[1]{0}', space=sflag, size = 0x4, scoped, tag = 'scoped memory for tpu_custom_call.1']
    #allocation5 [shape = 'u8[4096]{0}', space=vmem, size = 0x1000, scoped, tag = 'output window, operand 0, single buffered']
    %12 = vsyncpa [#allocation3], 0
    %13 = vsyncpa [#allocation4], 0
    // Predicated region
    $region2: #{tpu_custom_call.1} parent=1 // pred_check
      _
    $region3: #{tpu_custom_call.1} parent=1 // pred_check_branch
      %15 = sbr.rel (0) target = $region5
    $region4: #{tpu_custom_call.1} parent=1 // pred_region
      _
    $region5: #{tpu_custom_call.1} parent=1 // pred_fallthru
      _
    // Predicated region
    $region6: #{tpu_custom_call.1} parent=1 // pred_check
      _
    $region7: #{tpu_custom_call.1} parent=1 // pred_check_branch
      %17 = sbr.rel (0) target = $region9
    $region8: #{tpu_custom_call.1} parent=1 // pred_region
      _
    $region9: #{tpu_custom_call.1} parent=1 // pred_fallthru
      _
    // Predicated region
    $region10: #{tpu_custom_call.1} parent=1 // pred_check
      _
    $region11: #{tpu_custom_call.1} parent=1 // pred_check_branch
      %19 = sbr.rel (0) target = $region13
    $region12: #{tpu_custom_call.1} parent=1 // pred_region
      _
    $region13: #{tpu_custom_call.1} parent=1 // pred_fallthru
      _
    // Predicated region
    $region14: #{tpu_custom_call.1} parent=1 // pred_check
      _
    $region15: #{tpu_custom_call.1} parent=1 // pred_check_branch
      %21 = sbr.rel (0) target = $region17
    $region16: #{tpu_custom_call.1} parent=1 // pred_region
      %s23 = ssub.s32 10240, 10240
      %24 = vsyncadd [#allocation3], %s23
      %s25 = sshll.u32 [#allocation2], 4
      %s26 = int_to_ptr.vmem [resolvable:$true] %s25
      %31 = dma.hbm_to_vmem [thread:$0]  %s3, 10240, %s26, [#allocation3], 128, 128, 8
    $region17: #{tpu_custom_call.1} parent=1 // pred_fallthru
      _
    // Predicated region
    $region18: #{tpu_custom_call.1} parent=1 // pred_check
      _
    $region19: #{tpu_custom_call.1} parent=1 // pred_check_branch
      %33 = sbr.rel (0) target = $region21
    $region20: #{tpu_custom_call.1} parent=1 // pred_region
      _
    $region21: #{tpu_custom_call.1} parent=1 // pred_fallthru
      _
    // Predicated region
    $region22: #{tpu_custom_call.1} parent=1 // pred_check
      _
    $region23: #{tpu_custom_call.1} parent=1 // pred_check_branch
      %35 = sbr.rel (0) target = $region25
    $region24: #{tpu_custom_call.1} parent=1 // pred_region
      _
    $region25: #{tpu_custom_call.1} parent=1 // pred_fallthru
      _
    // Predicated region
    $region26: #{tpu_custom_call.1} parent=1 // pred_check
      _
    $region27: #{tpu_custom_call.1} parent=1 // pred_check_branch
      %37 = sbr.rel (0) target = $region29
    $region28: #{tpu_custom_call.1} parent=1 // pred_region
      _
    $region29: #{tpu_custom_call.1} parent=1 // pred_fallthru
      _
    // Predicated region
    $region30: #{tpu_custom_call.1} parent=1 // pred_check
      _
    $region31: #{tpu_custom_call.1} parent=1 // pred_check_branch
      %39 = sbr.rel (0) target = $region33
    $region32: #{tpu_custom_call.1} parent=1 // pred_region
      %40 = dma.done [#allocation3], 10240
    $region33: #{tpu_custom_call.1} parent=1 // pred_fallthru
      _
    %v41 = vld [vmem:[%s0] sm:$0xff]
    %v42 = vld [vmem:[%s1] sm:$0xff]
    %v43 = vld [vmem:[%s1 + $0x8] sm:$0xff]
    %v44 = vld [vmem:[%s1 + $0x10] sm:$0xff]
    %v45 = vld [vmem:[%s1 + $0x18] sm:$0xff]
    %v46 = vld [vmem:[%s2] sm:$0x1]
    %v48 = vlaneseq
    %v49 = vshrl.u32 %v48, 7
    %v50 = vsub.s32 0, %v49
    %v51 = vrot.slane %v46, %v50
    %vm53 = vcmask 261120
    %v55 = vsel %vm53, %v41, 0
    %57 = vmatprep.subr.mxu0 0.0
    %58 = vmatpush1.msra.mxu0 %v42
    %59 = vmatprep.subr.mxu0 0.0
    %60 = vmatpush1.msra.mxu0 %v43
    %61 = vmatprep.subr.mxu0 0.0
    %62 = vmatpush1.msra.mxu0 %v44
    %63 = vmatprep.subr.mxu0 0.0
    %64 = vmatpush1.msra.mxu0 %v45
    %65 = vmatprep.subr.mxu0 0.0
    %66 = vmatpush1.msra.mxu0 0.0
    %67 = vmatprep.subr.mxu0 0.0
    %68 = vmatpush1.msra.mxu0 0.0
    %69 = vmatprep.subr.mxu0 0.0
    %70 = vmatpush1.msra.mxu0 0.0
    %71 = vmatprep.subr.mxu0 0.0
    %72 = vmatpush1.msra.mxu0 0.0
    %73 = vmatprep.subr.mxu0 0.0
    %74 = vmatpush1.msra.mxu0 0.0
    %75 = vmatprep.subr.mxu0 0.0
    %76 = vmatpush1.msra.mxu0 0.0
    %77 = vmatprep.subr.mxu0 0.0
    %78 = vmatpush1.msra.mxu0 0.0
    %79 = vmatprep.subr.mxu0 0.0
    %80 = vmatpush1.msra.mxu0 0.0
    %81 = vmatprep.subr.mxu0 0.0
    %82 = vmatpush1.msra.mxu0 0.0
    %83 = vmatprep.subr.mxu0 0.0
    %84 = vmatpush1.msra.mxu0 0.0
    %85 = vmatprep.subr.mxu0 0.0
    %86 = vmatpush1.msra.mxu0 0.0
    %87 = vmatprep.subr.mxu0 0.0
    %88 = vmatpush1.msra.mxu0 0.0
    %89 = vmatprep.subr.mxu0 0.0
    %90 = vmatpush1.msra.mxu0 0.0
    %91 = vmatprep.subr.mxu0 0.0
    %92 = vmatpush1.msra.mxu0 0.0
    %93 = vmatprep.subr.mxu0 0.0
    %94 = vmatpush1.msra.mxu0 0.0
    %95 = vmatprep.subr.mxu0 0.0
    %96 = vmatpush1.msra.mxu0 0.0
    %97 = vmatprep.subr.mxu0 0.0
    %98 = vmatpush1.msra.mxu0 0.0
    %99 = vmatprep.subr.mxu0 0.0
    %100 = vmatpush1.msra.mxu0 0.0
    %101 = vmatprep.subr.mxu0 0.0
    %102 = vmatpush1.msra.mxu0 0.0
    %103 = vmatprep.subr.mxu0 0.0
    %104 = vmatpush1.msra.mxu0 0.0
    %105 = vmatprep.subr.mxu0 0.0
    %106 = vmatpush1.msra.mxu0 0.0
    %107 = vmatprep.subr.mxu0 0.0
    %108 = vmatpush1.msra.mxu0 0.0
    %109 = vmatprep.subr.mxu0 0.0
    %110 = vmatpush1.msra.mxu0 0.0
    %111 = vmatprep.subr.mxu0 0.0
    %112 = vmatpush1.msra.mxu0 0.0
    %113 = vmatprep.subr.mxu0 0.0
    %114 = vmatpush1.msra.mxu0 0.0
    %115 = vmatprep.subr.mxu0 0.0
    %116 = vmatpush1.msra.mxu0 0.0
    %117 = vmatprep.subr.mxu0 0.0
    %118 = vmatpush1.msra.mxu0 0.0
    %119 = vmatprep.subr.mxu0 0.0
    %120 = vmatpush1.msra.mxu0 0.0
    %121 = vmatprep.mubr.f32.mxu0 0.0
    %122 = vmatmul.mubr.f32.gmra.mrb[0].mxu0 %v55
    %v123 = vpop.f32.mrb[0].mxu0
    %v124 = vadd.f32 %v51, %v123
    %v125 = vpop.f32.mrb[0].mxu0
    %126 = vdwg.mxu0
    %v127 = vmax.f32 %v124, 0.0
    %v128 = vld [vmem:[#allocation2] sm:$0xff]
    %v129 = vld [vmem:[#allocation2 + $0x8] sm:$0xff]
    %v130 = vld [vmem:[#allocation2 + $0x10] sm:$0xff]
    %v131 = vld [vmem:[#allocation2 + $0x18] sm:$0xff]
    %v132 = vld [vmem:[#allocation2 + $0x20] sm:$0xff]
    %v133 = vld [vmem:[#allocation2 + $0x28] sm:$0xff]
    %v134 = vld [vmem:[#allocation2 + $0x30] sm:$0xff]
    %v135 = vld [vmem:[#allocation2 + $0x38] sm:$0xff]
    %v136 = vld [vmem:[#allocation2 + $0x40] sm:$0xff]
    %v137 = vld [vmem:[#allocation2 + $0x48] sm:$0xff]
    %v138 = vld [vmem:[#allocation2 + $0x50] sm:$0xff]
    %v139 = vld [vmem:[#allocation2 + $0x58] sm:$0xff]
    %v140 = vld [vmem:[#allocation2 + $0x60] sm:$0xff]
    %v141 = vld [vmem:[#allocation2 + $0x68] sm:$0xff]
    %v142 = vld [vmem:[#allocation2 + $0x70] sm:$0xff]
    %v143 = vld [vmem:[#allocation2 + $0x78] sm:$0xff]
    %v144 = vld [vmem:[%s4] sm:$0x1]
    %v146 = vlaneseq
    %v147 = vshrl.u32 %v146, 7
    %v148 = vsub.s32 0, %v147
    %v149 = vrot.slane %v144, %v148
    %151 = vmatprep.subr.mxu0 0.0
    %152 = vmatpush1.msra.mxu0 %v128
    %153 = vmatprep.subr.mxu0 0.0
    %154 = vmatpush1.msra.mxu0 %v129
    %155 = vmatprep.subr.mxu0 0.0
    %156 = vmatpush1.msra.mxu0 %v130
    %157 = vmatprep.subr.mxu0 0.0
    %158 = vmatpush1.msra.mxu0 %v131
    %159 = vmatprep.subr.mxu0 0.0
    %160 = vmatpush1.msra.mxu0 %v132
    %161 = vmatprep.subr.mxu0 0.0
    %162 = vmatpush1.msra.mxu0 %v133
    %163 = vmatprep.subr.mxu0 0.0
    %164 = vmatpush1.msra.mxu0 %v134
    %165 = vmatprep.subr.mxu0 0.0
    %166 = vmatpush1.msra.mxu0 %v135
    %167 = vmatprep.subr.mxu0 0.0
    %168 = vmatpush1.msra.mxu0 %v136
    %169 = vmatprep.subr.mxu0 0.0
    %170 = vmatpush1.msra.mxu0 %v137
    %171 = vmatprep.subr.mxu0 0.0
    %172 = vmatpush1.msra.mxu0 %v138
    %173 = vmatprep.subr.mxu0 0.0
    %174 = vmatpush1.msra.mxu0 %v139
    %175 = vmatprep.subr.mxu0 0.0
    %176 = vmatpush1.msra.mxu0 %v140
    %177 = vmatprep.subr.mxu0 0.0
    %178 = vmatpush1.msra.mxu0 %v141
    %179 = vmatprep.subr.mxu0 0.0
    %180 = vmatpush1.msra.mxu0 %v142
    %181 = vmatprep.subr.mxu0 0.0
    %182 = vmatpush1.msra.mxu0 %v143
    %183 = vmatprep.subr.mxu0 0.0
    %184 = vmatpush1.msra.mxu0 0.0
    %185 = vmatprep.subr.mxu0 0.0
    %186 = vmatpush1.msra.mxu0 0.0
    %187 = vmatprep.subr.mxu0 0.0
    %188 = vmatpush1.msra.mxu0 0.0
    %189 = vmatprep.subr.mxu0 0.0
    %190 = vmatpush1.msra.mxu0 0.0
    %191 = vmatprep.subr.mxu0 0.0
    %192 = vmatpush1.msra.mxu0 0.0
    %193 = vmatprep.subr.mxu0 0.0
    %194 = vmatpush1.msra.mxu0 0.0
    %195 = vmatprep.subr.mxu0 0.0
    %196 = vmatpush1.msra.mxu0 0.0
    %197 = vmatprep.subr.mxu0 0.0
    %198 = vmatpush1.msra.mxu0 0.0
    %199 = vmatprep.subr.mxu0 0.0
    %200 = vmatpush1.msra.mxu0 0.0
    %201 = vmatprep.subr.mxu0 0.0
    %202 = vmatpush1.msra.mxu0 0.0
    %203 = vmatprep.subr.mxu0 0.0
    %204 = vmatpush1.msra.mxu0 0.0
    %205 = vmatprep.subr.mxu0 0.0
    %206 = vmatpush1.msra.mxu0 0.0
    %207 = vmatprep.subr.mxu0 0.0
    %208 = vmatpush1.msra.mxu0 0.0
    %209 = vmatprep.subr.mxu0 0.0
    %210 = vmatpush1.msra.mxu0 0.0
    %211 = vmatprep.subr.mxu0 0.0
    %212 = vmatpush1.msra.mxu0 0.0
    %213 = vmatprep.subr.mxu0 0.0
    %214 = vmatpush1.msra.mxu0 0.0
    %215 = vmatprep.mubr.f32.mxu0 0.0
    %216 = vmatmul.mubr.f32.gmra.mrb[0].mxu0 %v127
    %v217 = vpop.f32.mrb[0].mxu0
    %v218 = vadd.f32 %v149, %v217
    %v219 = vpop.f32.mrb[0].mxu0
    %220 = vdwg.mxu0
    %v221 = vmax.f32 %v218, 0.0
    %s222 = scalar_lea.vmem [#allocation2], 128
    %v223 = vld [vmem:[%s222] sm:$0xff]
    %v224 = vld [vmem:[%s222 + $0x8] sm:$0xff]
    %v225 = vld [vmem:[%s222 + $0x10] sm:$0xff]
    %v226 = vld [vmem:[%s222 + $0x18] sm:$0xff]
    %v227 = vld [vmem:[%s222 + $0x20] sm:$0xff]
    %v228 = vld [vmem:[%s222 + $0x28] sm:$0xff]
    %v229 = vld [vmem:[%s222 + $0x30] sm:$0xff]
    %v230 = vld [vmem:[%s222 + $0x38] sm:$0xff]
    %v231 = vld [vmem:[%s222 + $0x40] sm:$0xff]
    %v232 = vld [vmem:[%s222 + $0x48] sm:$0xff]
    %v233 = vld [vmem:[%s222 + $0x50] sm:$0xff]
    %v234 = vld [vmem:[%s222 + $0x58] sm:$0xff]
    %v235 = vld [vmem:[%s222 + $0x60] sm:$0xff]
    %v236 = vld [vmem:[%s222 + $0x68] sm:$0xff]
    %v237 = vld [vmem:[%s222 + $0x70] sm:$0xff]
    %v238 = vld [vmem:[%s222 + $0x78] sm:$0xff]
    %s239 = scalar_lea.vmem %s4, 1
    %v240 = vld [vmem:[%s239] sm:$0x1]
    %v242 = vlaneseq
    %v243 = vshrl.u32 %v242, 7
    %v244 = vsub.s32 0, %v243
    %v245 = vrot.slane %v240, %v244
    %247 = vmatprep.subr.mxu0 0.0
    %248 = vmatpush1.msra.mxu0 %v223
    %249 = vmatprep.subr.mxu0 0.0
    %250 = vmatpush1.msra.mxu0 %v224
    %251 = vmatprep.subr.mxu0 0.0
    %252 = vmatpush1.msra.mxu0 %v225
    %253 = vmatprep.subr.mxu0 0.0
    %254 = vmatpush1.msra.mxu0 %v226
    %255 = vmatprep.subr.mxu0 0.0
    %256 = vmatpush1.msra.mxu0 %v227
    %257 = vmatprep.subr.mxu0 0.0
    %258 = vmatpush1.msra.mxu0 %v228
    %259 = vmatprep.subr.mxu0 0.0
    %260 = vmatpush1.msra.mxu0 %v229
    %261 = vmatprep.subr.mxu0 0.0
    %262 = vmatpush1.msra.mxu0 %v230
    %263 = vmatprep.subr.mxu0 0.0
    %264 = vmatpush1.msra.mxu0 %v231
    %265 = vmatprep.subr.mxu0 0.0
    %266 = vmatpush1.msra.mxu0 %v232
    %267 = vmatprep.subr.mxu0 0.0
    %268 = vmatpush1.msra.mxu0 %v233
    %269 = vmatprep.subr.mxu0 0.0
    %270 = vmatpush1.msra.mxu0 %v234
    %271 = vmatprep.subr.mxu0 0.0
    %272 = vmatpush1.msra.mxu0 %v235
    %273 = vmatprep.subr.mxu0 0.0
    %274 = vmatpush1.msra.mxu0 %v236
    %275 = vmatprep.subr.mxu0 0.0
    %276 = vmatpush1.msra.mxu0 %v237
    %277 = vmatprep.subr.mxu0 0.0
    %278 = vmatpush1.msra.mxu0 %v238
    %279 = vmatprep.subr.mxu0 0.0
    %280 = vmatpush1.msra.mxu0 0.0
    %281 = vmatprep.subr.mxu0 0.0
    %282 = vmatpush1.msra.mxu0 0.0
    %283 = vmatprep.subr.mxu0 0.0
    %284 = vmatpush1.msra.mxu0 0.0
    %285 = vmatprep.subr.mxu0 0.0
    %286 = vmatpush1.msra.mxu0 0.0
    %287 = vmatprep.subr.mxu0 0.0
    %288 = vmatpush1.msra.mxu0 0.0
    %289 = vmatprep.subr.mxu0 0.0
    %290 = vmatpush1.msra.mxu0 0.0
    %291 = vmatprep.subr.mxu0 0.0
    %292 = vmatpush1.msra.mxu0 0.0
    %293 = vmatprep.subr.mxu0 0.0
    %294 = vmatpush1.msra.mxu0 0.0
    %295 = vmatprep.subr.mxu0 0.0
    %296 = vmatpush1.msra.mxu0 0.0
    %297 = vmatprep.subr.mxu0 0.0
    %298 = vmatpush1.msra.mxu0 0.0
    %299 = vmatprep.subr.mxu0 0.0
    %300 = vmatpush1.msra.mxu0 0.0
    %301 = vmatprep.subr.mxu0 0.0
    %302 = vmatpush1.msra.mxu0 0.0
    %303 = vmatprep.subr.mxu0 0.0
    %304 = vmatpush1.msra.mxu0 0.0
    %305 = vmatprep.subr.mxu0 0.0
    %306 = vmatpush1.msra.mxu0 0.0
    %307 = vmatprep.subr.mxu0 0.0
    %308 = vmatpush1.msra.mxu0 0.0
    %309 = vmatprep.subr.mxu0 0.0
    %310 = vmatpush1.msra.mxu0 0.0
    %311 = vmatprep.mubr.f32.mxu0 0.0
    %312 = vmatmul.mubr.f32.gmra.mrb[0].mxu0 %v221
    %v313 = vpop.f32.mrb[0].mxu0
    %v314 = vadd.f32 %v245, %v313
    %v315 = vpop.f32.mrb[0].mxu0
    %316 = vdwg.mxu0
    %v317 = vmax.f32 %v314, 0.0
    %s318 = scalar_lea.vmem [#allocation2], 256
    %v319 = vld [vmem:[%s318] sm:$0xff]
    %v320 = vld [vmem:[%s318 + $0x8] sm:$0xff]
    %v321 = vld [vmem:[%s318 + $0x10] sm:$0xff]
    %v322 = vld [vmem:[%s318 + $0x18] sm:$0xff]
    %v323 = vld [vmem:[%s318 + $0x20] sm:$0xff]
    %v324 = vld [vmem:[%s318 + $0x28] sm:$0xff]
    %v325 = vld [vmem:[%s318 + $0x30] sm:$0xff]
    %v326 = vld [vmem:[%s318 + $0x38] sm:$0xff]
    %v327 = vld [vmem:[%s318 + $0x40] sm:$0xff]
    %v328 = vld [vmem:[%s318 + $0x48] sm:$0xff]
    %v329 = vld [vmem:[%s318 + $0x50] sm:$0xff]
    %v330 = vld [vmem:[%s318 + $0x58] sm:$0xff]
    %v331 = vld [vmem:[%s318 + $0x60] sm:$0xff]
    %v332 = vld [vmem:[%s318 + $0x68] sm:$0xff]
    %v333 = vld [vmem:[%s318 + $0x70] sm:$0xff]
    %v334 = vld [vmem:[%s318 + $0x78] sm:$0xff]
    %s335 = scalar_lea.vmem %s4, 2
    %v336 = vld [vmem:[%s335] sm:$0x1]
    %v338 = vlaneseq
    %v339 = vshrl.u32 %v338, 7
    %v340 = vsub.s32 0, %v339
    %v341 = vrot.slane %v336, %v340
    %343 = vmatprep.subr.mxu0 0.0
    %344 = vmatpush1.msra.mxu0 %v319
    %345 = vmatprep.subr.mxu0 0.0
    %346 = vmatpush1.msra.mxu0 %v320
    %347 = vmatprep.subr.mxu0 0.0
    %348 = vmatpush1.msra.mxu0 %v321
    %349 = vmatprep.subr.mxu0 0.0
    %350 = vmatpush1.msra.mxu0 %v322
    %351 = vmatprep.subr.mxu0 0.0
    %352 = vmatpush1.msra.mxu0 %v323
    %353 = vmatprep.subr.mxu0 0.0
    %354 = vmatpush1.msra.mxu0 %v324
    %355 = vmatprep.subr.mxu0 0.0
    %356 = vmatpush1.msra.mxu0 %v325
    %357 = vmatprep.subr.mxu0 0.0
    %358 = vmatpush1.msra.mxu0 %v326
    %359 = vmatprep.subr.mxu0 0.0
    %360 = vmatpush1.msra.mxu0 %v327
    %361 = vmatprep.subr.mxu0 0.0
    %362 = vmatpush1.msra.mxu0 %v328
    %363 = vmatprep.subr.mxu0 0.0
    %364 = vmatpush1.msra.mxu0 %v329
    %365 = vmatprep.subr.mxu0 0.0
    %366 = vmatpush1.msra.mxu0 %v330
    %367 = vmatprep.subr.mxu0 0.0
    %368 = vmatpush1.msra.mxu0 %v331
    %369 = vmatprep.subr.mxu0 0.0
    %370 = vmatpush1.msra.mxu0 %v332
    %371 = vmatprep.subr.mxu0 0.0
    %372 = vmatpush1.msra.mxu0 %v333
    %373 = vmatprep.subr.mxu0 0.0
    %374 = vmatpush1.msra.mxu0 %v334
    %375 = vmatprep.subr.mxu0 0.0
    %376 = vmatpush1.msra.mxu0 0.0
    %377 = vmatprep.subr.mxu0 0.0
    %378 = vmatpush1.msra.mxu0 0.0
    %379 = vmatprep.subr.mxu0 0.0
    %380 = vmatpush1.msra.mxu0 0.0
    %381 = vmatprep.subr.mxu0 0.0
    %382 = vmatpush1.msra.mxu0 0.0
    %383 = vmatprep.subr.mxu0 0.0
    %384 = vmatpush1.msra.mxu0 0.0
    %385 = vmatprep.subr.mxu0 0.0
    %386 = vmatpush1.msra.mxu0 0.0
    %387 = vmatprep.subr.mxu0 0.0
    %388 = vmatpush1.msra.mxu0 0.0
    %389 = vmatprep.subr.mxu0 0.0
    %390 = vmatpush1.msra.mxu0 0.0
    %391 = vmatprep.subr.mxu0 0.0
    %392 = vmatpush1.msra.mxu0 0.0
    %393 = vmatprep.subr.mxu0 0.0
    %394 = vmatpush1.msra.mxu0 0.0
    %395 = vmatprep.subr.mxu0 0.0
    %396 = vmatpush1.msra.mxu0 0.0
    %397 = vmatprep.subr.mxu0 0.0
    %398 = vmatpush1.msra.mxu0 0.0
    %399 = vmatprep.subr.mxu0 0.0
    %400 = vmatpush1.msra.mxu0 0.0
    %401 = vmatprep.subr.mxu0 0.0
    %402 = vmatpush1.msra.mxu0 0.0
    %403 = vmatprep.subr.mxu0 0.0
    %404 = vmatpush1.msra.mxu0 0.0
    %405 = vmatprep.subr.mxu0 0.0
    %406 = vmatpush1.msra.mxu0 0.0
    %407 = vmatprep.mubr.f32.mxu0 0.0
    %408 = vmatmul.mubr.f32.gmra.mrb[0].mxu0 %v317
    %v409 = vpop.f32.mrb[0].mxu0
    %v410 = vadd.f32 %v341, %v409
    %v411 = vpop.f32.mrb[0].mxu0
    %412 = vdwg.mxu0
    %v413 = vmax.f32 %v410, 0.0
    %s414 = scalar_lea.vmem [#allocation2], 384
    %v415 = vld [vmem:[%s414] sm:$0xff]
    %v416 = vld [vmem:[%s414 + $0x8] sm:$0xff]
    %v417 = vld [vmem:[%s414 + $0x10] sm:$0xff]
    %v418 = vld [vmem:[%s414 + $0x18] sm:$0xff]
    %v419 = vld [vmem:[%s414 + $0x20] sm:$0xff]
    %v420 = vld [vmem:[%s414 + $0x28] sm:$0xff]
    %v421 = vld [vmem:[%s414 + $0x30] sm:$0xff]
    %v422 = vld [vmem:[%s414 + $0x38] sm:$0xff]
    %v423 = vld [vmem:[%s414 + $0x40] sm:$0xff]
    %v424 = vld [vmem:[%s414 + $0x48] sm:$0xff]
    %v425 = vld [vmem:[%s414 + $0x50] sm:$0xff]
    %v426 = vld [vmem:[%s414 + $0x58] sm:$0xff]
    %v427 = vld [vmem:[%s414 + $0x60] sm:$0xff]
    %v428 = vld [vmem:[%s414 + $0x68] sm:$0xff]
    %v429 = vld [vmem:[%s414 + $0x70] sm:$0xff]
    %v430 = vld [vmem:[%s414 + $0x78] sm:$0xff]
    %s431 = scalar_lea.vmem %s4, 3
    %v432 = vld [vmem:[%s431] sm:$0x1]
    %v434 = vlaneseq
    %v435 = vshrl.u32 %v434, 7
    %v436 = vsub.s32 0, %v435
    %v437 = vrot.slane %v432, %v436
    %439 = vmatprep.subr.mxu0 0.0
    %440 = vmatpush1.msra.mxu0 %v415
    %441 = vmatprep.subr.mxu0 0.0
    %442 = vmatpush1.msra.mxu0 %v416
    %443 = vmatprep.subr.mxu0 0.0
    %444 = vmatpush1.msra.mxu0 %v417
    %445 = vmatprep.subr.mxu0 0.0
    %446 = vmatpush1.msra.mxu0 %v418
    %447 = vmatprep.subr.mxu0 0.0
    %448 = vmatpush1.msra.mxu0 %v419
    %449 = vmatprep.subr.mxu0 0.0
    %450 = vmatpush1.msra.mxu0 %v420
    %451 = vmatprep.subr.mxu0 0.0
    %452 = vmatpush1.msra.mxu0 %v421
    %453 = vmatprep.subr.mxu0 0.0
    %454 = vmatpush1.msra.mxu0 %v422
    %455 = vmatprep.subr.mxu0 0.0
    %456 = vmatpush1.msra.mxu0 %v423
    %457 = vmatprep.subr.mxu0 0.0
    %458 = vmatpush1.msra.mxu0 %v424
    %459 = vmatprep.subr.mxu0 0.0
    %460 = vmatpush1.msra.mxu0 %v425
    %461 = vmatprep.subr.mxu0 0.0
    %462 = vmatpush1.msra.mxu0 %v426
    %463 = vmatprep.subr.mxu0 0.0
    %464 = vmatpush1.msra.mxu0 %v427
    %465 = vmatprep.subr.mxu0 0.0
    %466 = vmatpush1.msra.mxu0 %v428
    %467 = vmatprep.subr.mxu0 0.0
    %468 = vmatpush1.msra.mxu0 %v429
    %469 = vmatprep.subr.mxu0 0.0
    %470 = vmatpush1.msra.mxu0 %v430
    %471 = vmatprep.subr.mxu0 0.0
    %472 = vmatpush1.msra.mxu0 0.0
    %473 = vmatprep.subr.mxu0 0.0
    %474 = vmatpush1.msra.mxu0 0.0
    %475 = vmatprep.subr.mxu0 0.0
    %476 = vmatpush1.msra.mxu0 0.0
    %477 = vmatprep.subr.mxu0 0.0
    %478 = vmatpush1.msra.mxu0 0.0
    %479 = vmatprep.subr.mxu0 0.0
    %480 = vmatpush1.msra.mxu0 0.0
    %481 = vmatprep.subr.mxu0 0.0
    %482 = vmatpush1.msra.mxu0 0.0
    %483 = vmatprep.subr.mxu0 0.0
    %484 = vmatpush1.msra.mxu0 0.0
    %485 = vmatprep.subr.mxu0 0.0
    %486 = vmatpush1.msra.mxu0 0.0
    %487 = vmatprep.subr.mxu0 0.0
    %488 = vmatpush1.msra.mxu0 0.0
    %489 = vmatprep.subr.mxu0 0.0
    %490 = vmatpush1.msra.mxu0 0.0
    %491 = vmatprep.subr.mxu0 0.0
    %492 = vmatpush1.msra.mxu0 0.0
    %493 = vmatprep.subr.mxu0 0.0
    %494 = vmatpush1.msra.mxu0 0.0
    %495 = vmatprep.subr.mxu0 0.0
    %496 = vmatpush1.msra.mxu0 0.0
    %497 = vmatprep.subr.mxu0 0.0
    %498 = vmatpush1.msra.mxu0 0.0
    %499 = vmatprep.subr.mxu0 0.0
    %500 = vmatpush1.msra.mxu0 0.0
    %501 = vmatprep.subr.mxu0 0.0
    %502 = vmatpush1.msra.mxu0 0.0
    %503 = vmatprep.mubr.f32.mxu0 0.0
    %504 = vmatmul.mubr.f32.gmra.mrb[0].mxu0 %v413
    %v505 = vpop.f32.mrb[0].mxu0
    %v506 = vadd.f32 %v437, %v505
    %v507 = vpop.f32.mrb[0].mxu0
    %508 = vdwg.mxu0
    %v509 = vmax.f32 %v506, 0.0
    %s510 = scalar_lea.vmem [#allocation2], 512
    %v511 = vld [vmem:[%s510] sm:$0xff]
    %v512 = vld [vmem:[%s510 + $0x8] sm:$0xff]
    %v513 = vld [vmem:[%s510 + $0x10] sm:$0xff]
    %v514 = vld [vmem:[%s510 + $0x18] sm:$0xff]
    %v515 = vld [vmem:[%s510 + $0x20] sm:$0xff]
    %v516 = vld [vmem:[%s510 + $0x28] sm:$0xff]
    %v517 = vld [vmem:[%s510 + $0x30] sm:$0xff]
    %v518 = vld [vmem:[%s510 + $0x38] sm:$0xff]
    %v519 = vld [vmem:[%s510 + $0x40] sm:$0xff]
    %v520 = vld [vmem:[%s510 + $0x48] sm:$0xff]
    %v521 = vld [vmem:[%s510 + $0x50] sm:$0xff]
    %v522 = vld [vmem:[%s510 + $0x58] sm:$0xff]
    %v523 = vld [vmem:[%s510 + $0x60] sm:$0xff]
    %v524 = vld [vmem:[%s510 + $0x68] sm:$0xff]
    %v525 = vld [vmem:[%s510 + $0x70] sm:$0xff]
    %v526 = vld [vmem:[%s510 + $0x78] sm:$0xff]
    %s527 = scalar_lea.vmem %s4, 4
    %v528 = vld [vmem:[%s527] sm:$0x1]
    %v530 = vlaneseq
    %v531 = vshrl.u32 %v530, 7
    %v532 = vsub.s32 0, %v531
    %v533 = vrot.slane %v528, %v532
    %535 = vmatprep.subr.mxu0 0.0
    %536 = vmatpush1.msra.mxu0 %v511
    %537 = vmatprep.subr.mxu0 0.0
    %538 = vmatpush1.msra.mxu0 %v512
    %539 = vmatprep.subr.mxu0 0.0
    %540 = vmatpush1.msra.mxu0 %v513
    %541 = vmatprep.subr.mxu0 0.0
    %542 = vmatpush1.msra.mxu0 %v514
    %543 = vmatprep.subr.mxu0 0.0
    %544 = vmatpush1.msra.mxu0 %v515
    %545 = vmatprep.subr.mxu0 0.0
    %546 = vmatpush1.msra.mxu0 %v516
    %547 = vmatprep.subr.mxu0 0.0
    %548 = vmatpush1.msra.mxu0 %v517
    %549 = vmatprep.subr.mxu0 0.0
    %550 = vmatpush1.msra.mxu0 %v518
    %551 = vmatprep.subr.mxu0 0.0
    %552 = vmatpush1.msra.mxu0 %v519
    %553 = vmatprep.subr.mxu0 0.0
    %554 = vmatpush1.msra.mxu0 %v520
    %555 = vmatprep.subr.mxu0 0.0
    %556 = vmatpush1.msra.mxu0 %v521
    %557 = vmatprep.subr.mxu0 0.0
    %558 = vmatpush1.msra.mxu0 %v522
    %559 = vmatprep.subr.mxu0 0.0
    %560 = vmatpush1.msra.mxu0 %v523
    %561 = vmatprep.subr.mxu0 0.0
    %562 = vmatpush1.msra.mxu0 %v524
    %563 = vmatprep.subr.mxu0 0.0
    %564 = vmatpush1.msra.mxu0 %v525
    %565 = vmatprep.subr.mxu0 0.0
    %566 = vmatpush1.msra.mxu0 %v526
    %567 = vmatprep.subr.mxu0 0.0
    %568 = vmatpush1.msra.mxu0 0.0
    %569 = vmatprep.subr.mxu0 0.0
    %570 = vmatpush1.msra.mxu0 0.0
    %571 = vmatprep.subr.mxu0 0.0
    %572 = vmatpush1.msra.mxu0 0.0
    %573 = vmatprep.subr.mxu0 0.0
    %574 = vmatpush1.msra.mxu0 0.0
    %575 = vmatprep.subr.mxu0 0.0
    %576 = vmatpush1.msra.mxu0 0.0
    %577 = vmatprep.subr.mxu0 0.0
    %578 = vmatpush1.msra.mxu0 0.0
    %579 = vmatprep.subr.mxu0 0.0
    %580 = vmatpush1.msra.mxu0 0.0
    %581 = vmatprep.subr.mxu0 0.0
    %582 = vmatpush1.msra.mxu0 0.0
    %583 = vmatprep.subr.mxu0 0.0
    %584 = vmatpush1.msra.mxu0 0.0
    %585 = vmatprep.subr.mxu0 0.0
    %586 = vmatpush1.msra.mxu0 0.0
    %587 = vmatprep.subr.mxu0 0.0
    %588 = vmatpush1.msra.mxu0 0.0
    %589 = vmatprep.subr.mxu0 0.0
    %590 = vmatpush1.msra.mxu0 0.0
    %591 = vmatprep.subr.mxu0 0.0
    %592 = vmatpush1.msra.mxu0 0.0
    %593 = vmatprep.subr.mxu0 0.0
    %594 = vmatpush1.msra.mxu0 0.0
    %595 = vmatprep.subr.mxu0 0.0
    %596 = vmatpush1.msra.mxu0 0.0
    %597 = vmatprep.subr.mxu0 0.0
    %598 = vmatpush1.msra.mxu0 0.0
    %599 = vmatprep.mubr.f32.mxu0 0.0
    %600 = vmatmul.mubr.f32.gmra.mrb[0].mxu0 %v509
    %v601 = vpop.f32.mrb[0].mxu0
    %v602 = vadd.f32 %v533, %v601
    %v603 = vpop.f32.mrb[0].mxu0
    %604 = vdwg.mxu0
    %v605 = vmax.f32 %v602, 0.0
    %v606 = vld [vmem:[%s5] sm:$0xff]
    %v607 = vld [vmem:[%s5 + $0x8] sm:$0xff]
    %v608 = vld [vmem:[%s5 + $0x10] sm:$0xff]
    %v609 = vld [vmem:[%s5 + $0x18] sm:$0xff]
    %v610 = vld [vmem:[%s5 + $0x20] sm:$0xff]
    %v611 = vld [vmem:[%s5 + $0x28] sm:$0xff]
    %v612 = vld [vmem:[%s5 + $0x30] sm:$0xff]
    %v613 = vld [vmem:[%s5 + $0x38] sm:$0xff]
    %v614 = vld [vmem:[%s5 + $0x40] sm:$0xff]
    %v615 = vld [vmem:[%s5 + $0x48] sm:$0xff]
    %v616 = vld [vmem:[%s5 + $0x50] sm:$0xff]
    %v617 = vld [vmem:[%s5 + $0x58] sm:$0xff]
    %v618 = vld [vmem:[%s5 + $0x60] sm:$0xff]
    %v619 = vld [vmem:[%s5 + $0x68] sm:$0xff]
    %v620 = vld [vmem:[%s5 + $0x70] sm:$0xff]
    %v621 = vld [vmem:[%s5 + $0x78] sm:$0xff]
    %v622 = vld [vmem:[%s6] sm:$0x1]
    %v624 = vlaneseq
    %v625 = vshrl.u32 %v624, 7
    %v626 = vsub.s32 0, %v625
    %v627 = vrot.slane %v622, %v626
    %629 = vmatprep.subr.mxu0 0.0
    %630 = vmatpush1.msra.mxu0 %v606
    %631 = vmatprep.subr.mxu0 0.0
    %632 = vmatpush1.msra.mxu0 %v607
    %633 = vmatprep.subr.mxu0 0.0
    %634 = vmatpush1.msra.mxu0 %v608
    %635 = vmatprep.subr.mxu0 0.0
    %636 = vmatpush1.msra.mxu0 %v609
    %637 = vmatprep.subr.mxu0 0.0
    %638 = vmatpush1.msra.mxu0 %v610
    %639 = vmatprep.subr.mxu0 0.0
    %640 = vmatpush1.msra.mxu0 %v611
    %641 = vmatprep.subr.mxu0 0.0
    %642 = vmatpush1.msra.mxu0 %v612
    %643 = vmatprep.subr.mxu0 0.0
    %644 = vmatpush1.msra.mxu0 %v613
    %645 = vmatprep.subr.mxu0 0.0
    %646 = vmatpush1.msra.mxu0 %v614
    %647 = vmatprep.subr.mxu0 0.0
    %648 = vmatpush1.msra.mxu0 %v615
    %649 = vmatprep.subr.mxu0 0.0
    %650 = vmatpush1.msra.mxu0 %v616
    %651 = vmatprep.subr.mxu0 0.0
    %652 = vmatpush1.msra.mxu0 %v617
    %653 = vmatprep.subr.mxu0 0.0
    %654 = vmatpush1.msra.mxu0 %v618
    %655 = vmatprep.subr.mxu0 0.0
    %656 = vmatpush1.msra.mxu0 %v619
    %657 = vmatprep.subr.mxu0 0.0
    %658 = vmatpush1.msra.mxu0 %v620
    %659 = vmatprep.subr.mxu0 0.0
    %660 = vmatpush1.msra.mxu0 %v621
    %661 = vmatprep.subr.mxu0 0.0
    %662 = vmatpush1.msra.mxu0 0.0
    %663 = vmatprep.subr.mxu0 0.0
    %664 = vmatpush1.msra.mxu0 0.0
    %665 = vmatprep.subr.mxu0 0.0
    %666 = vmatpush1.msra.mxu0 0.0
    %667 = vmatprep.subr.mxu0 0.0
    %668 = vmatpush1.msra.mxu0 0.0
    %669 = vmatprep.subr.mxu0 0.0
    %670 = vmatpush1.msra.mxu0 0.0
    %671 = vmatprep.subr.mxu0 0.0
    %672 = vmatpush1.msra.mxu0 0.0
    %673 = vmatprep.subr.mxu0 0.0
    %674 = vmatpush1.msra.mxu0 0.0
    %675 = vmatprep.subr.mxu0 0.0
    %676 = vmatpush1.msra.mxu0 0.0
    %677 = vmatprep.subr.mxu0 0.0
    %678 = vmatpush1.msra.mxu0 0.0
    %679 = vmatprep.subr.mxu0 0.0
    %680 = vmatpush1.msra.mxu0 0.0
    %681 = vmatprep.subr.mxu0 0.0
    %682 = vmatpush1.msra.mxu0 0.0
    %683 = vmatprep.subr.mxu0 0.0
    %684 = vmatpush1.msra.mxu0 0.0
    %685 = vmatprep.subr.mxu0 0.0
    %686 = vmatpush1.msra.mxu0 0.0
    %687 = vmatprep.subr.mxu0 0.0
    %688 = vmatpush1.msra.mxu0 0.0
    %689 = vmatprep.subr.mxu0 0.0
    %690 = vmatpush1.msra.mxu0 0.0
    %691 = vmatprep.subr.mxu0 0.0
    %692 = vmatpush1.msra.mxu0 0.0
    %693 = vmatprep.mubr.f32.mxu0 0.0
    %694 = vmatmul.mubr.f32.gmra.mrb[0].mxu0 %v605
    %v695 = vpop.f32.mrb[0].mxu0
    %v696 = vadd.f32 %v627, %v695
    %v697 = vpop.f32.mrb[0].mxu0
    %698 = vdwg.mxu0
    %v699 = vxor.u32 %v696, 2147483648
    %v700 = vmul.f32 %v699, 1.442695
    %v701 = vpow.pop %v700
    %v702 = vadd.f32 %v701, 1.0
    %v703 = vrcp.pop %v702
    %v704 = vmul.f32 1.0, %v703
    %vm705 = vcmask 130048
    %706 = vst.msk [vmem:[#allocation5] sm:$0xff] %vm705, %v704
    // Predicated region
    $region34: #{tpu_custom_call.1} parent=1 // pred_check
      _
    $region35: #{tpu_custom_call.1} parent=1 // pred_check_branch
      %708 = sbr.rel (0) target = $region37
    $region36: #{tpu_custom_call.1} parent=1 // pred_region
      %s710 = ssub.s32 128, 128
      %711 = vsyncadd [#allocation4], %s710
      %s713 = sshll.u32 [#allocation5], 4
      %s714 = int_to_ptr.vmem [resolvable:$true] %s713
      %716 = dma.vmem_to_hbm [thread:$0]  %s714, 128, %s7, [#allocation4]
    $region37: #{tpu_custom_call.1} parent=1 // pred_fallthru
      _
    // Predicated region
    $region38: #{tpu_custom_call.1} parent=1 // pred_check
      _
    $region39: #{tpu_custom_call.1} parent=1 // pred_check_branch
      %718 = sbr.rel (0) target = $region41
    $region40: #{tpu_custom_call.1} parent=1 // pred_region
      %719 = dma.done [#allocation4], 128
    $region41: #{tpu_custom_call.1} parent=1 // pred_fallthru
      _
    %720 = vsyncpa [#allocation3], 1
    %721 = vsyncpa [#allocation4], 1

</llo_original>
